<compile_context>
chip_gen: v7x
topology: tpu7x:2x2x1
jax: 0.10.0
libtpu: 0.0.40
codegen_flags: <defaults>
</compile_context>

<pallas_src>
from functools import partial

import jax
import jax.numpy as jnp
from jax.experimental import pallas as pl
from jax.experimental.pallas import tpu as pltpu

HIDDEN = 30        # fixed by the module
H_PAD = 32         # hidden padded to f32 sublane granularity
TILE_B_MAX = 512   # max batch tile on the lane axis (multiple of 128)


def _round_up(x, m):
    return ((x + m - 1) // m) * m


def cnetq_kernel(sa_ref, w1_ref, b1_ref, wo_ref, bo_ref, q_ref):
    # sa_ref: [in_dim, TILE_B]   (batch on lanes)
    # w1_ref: [H_PAD, in_dim]    b1_ref: [H_PAD, 1]
    # wo_ref: [1, H_PAD]         bo_ref: [1, 1] scalar in SMEM
    net = jnp.dot(w1_ref[...], sa_ref[...],
                  preferred_element_type=jnp.float32)          # [H_PAD, TILE_B]
    net = jnp.maximum(net + b1_ref[...], 0.0)                  # bias + relu
    q = jnp.dot(wo_ref[...], net,
                preferred_element_type=jnp.float32) + bo_ref[0, 0]
    q_ref[...] = q.astype(q_ref.dtype)                         # [1, TILE_B]


@jax.jit
def cnetq_forward_pallas(s, a, fused):
    """s: [B, s_dim], a: [B, a_dim]; fused: output of fuse_params(). -> [B, 1]"""
    B = s.shape[0]
    w1, b1, wo, bo = fused["w1"], fused["b1"], fused["wo"], fused["bo"]
    in_dim = w1.shape[1]

    # Tile selection: one grid step whenever B <= TILE_B_MAX (minimal padding),
    # otherwise stream full 512-wide lane tiles.
    tile_b = min(TILE_B_MAX, _round_up(max(B, 1), 128))
    B_pad = _round_up(max(B, 1), tile_b)

    # [s | a] -> feature-major [in_dim, B_pad]; batch padded to full lane tiles.
    sa = jnp.concatenate([s, a], axis=1)
    sa = jnp.pad(sa, ((0, B_pad - B), (0, 0))).T               # [in_dim, B_pad]

    q_lane = pl.pallas_call(
        cnetq_kernel,
        out_shape=jax.ShapeDtypeStruct((1, B_pad), jnp.float32),
        grid=(B_pad // tile_b,),
        in_specs=[
            pl.BlockSpec((in_dim, tile_b), lambda i: (0, i)),    # streamed
            pl.BlockSpec((H_PAD, in_dim), lambda i: (0, 0)),     # resident
            pl.BlockSpec((H_PAD, 1), lambda i: (0, 0)),          # resident
            pl.BlockSpec((1, H_PAD), lambda i: (0, 0)),          # resident
            pl.BlockSpec(memory_space=pltpu.MemorySpace.SMEM),   # bo scalar
        ],
        out_specs=pl.BlockSpec((1, tile_b), lambda i: (0, i)),
        compiler_params=pltpu.CompilerParams(
            dimension_semantics=("parallel",)),
    )(sa, w1, b1, wo, bo)

    return q_lane[:, :B].T                                       # [B, 1]


def cnetq_forward_xla(s, a, fused):
    """Plain-XLA path for tiny batches (three fused GEMVs beat a custom call)."""
    sa = jnp.concatenate([s, a], axis=1)
    net = jnp.maximum(sa @ fused["w1"].T + fused["b1"].T, 0.0)
    return net @ fused["wo"].T + fused["bo"]


def cnetq_forward(s, a, fused, *, min_pallas_batch=0):
    """Production code would set min_pallas_batch ~ 1024; 0 here so the
    Pallas kernel is always exercised in the test."""
    if s.shape[0] < min_pallas_batch:
        return cnetq_forward_xla(s, a, fused)
    return cnetq_forward_pallas(s, a, fused)


def fuse_params(params):
    """Fold the module's {ws,bs,wa,ba,wo,bo} (stored as [in,out]/[1,out]) into
    the fused, zero-padded, feature-major tensors consumed by the kernel."""
    w1 = jnp.concatenate([params["ws"], params["wa"]], axis=0)        # [in, 30]
    w1 = jnp.pad(w1, ((0, 0), (0, H_PAD - HIDDEN))).T                 # [32, in]
    b1 = jnp.pad(params["bs"] + params["ba"],
                 ((0, 0), (0, H_PAD - HIDDEN))).reshape(H_PAD, 1)     # [32, 1]
    wo = jnp.pad(params["wo"], ((0, H_PAD - HIDDEN), (0, 0))).reshape(1, H_PAD)
    bo = params["bo"].reshape(1, 1)
    return {"w1": w1, "b1": b1, "wo": wo, "bo": bo}


def init_params(key, s_dim, a_dim):
    """Weights ~ N(0, 0.1) as in the PyTorch __init__; biases small
    deterministic normals (exact PyTorch uniform bias init not required)."""
    k1, k2, k3, k4, k5, k6 = jax.random.split(key, 6)
    return {
        # stored as [in, out] == PyTorch weight.T
        "ws": 0.1 * jax.random.normal(k1, (s_dim, HIDDEN), jnp.float32),
        "bs": 0.01 * jax.random.normal(k2, (1, HIDDEN), jnp.float32),
        "wa": 0.1 * jax.random.normal(k3, (a_dim, HIDDEN), jnp.float32),
        "ba": 0.01 * jax.random.normal(k4, (1, HIDDEN), jnp.float32),
        "wo": 0.1 * jax.random.normal(k5, (HIDDEN, 1), jnp.float32),
        "bo": 0.01 * jax.random.normal(k6, (1, 1), jnp.float32),
    }


def reference_forward(s, a, params):
    x = s @ params["ws"] + params["bs"]
    y = a @ params["wa"] + params["ba"]
    net = jnp.maximum(x + y, 0.0)
    return net @ params["wo"] + params["bo"]


if __name__ == "__main__":
    key = jax.random.PRNGKey(0)
    kp, ks, ka, ks2, ka2 = jax.random.split(key, 5)

    s_dim, a_dim = 4, 2
    params = init_params(kp, s_dim, a_dim)
    fused = fuse_params(params)

    # Small batch (pads to a single 128-lane tile, grid = 1).
    s1 = jax.random.normal(ks, (2, s_dim), jnp.float32)
    a1 = jax.random.normal(ka, (2, a_dim), jnp.float32)
    q1 = jax.block_until_ready(cnetq_forward(s1, a1, fused))
    ref1 = reference_forward(s1, a1, params)
    assert q1.shape == (2, 1)
    assert jnp.allclose(q1, ref1, atol=1e-5, rtol=1e-5), (q1, ref1)

    # Medium batch (384-lane single tile).
    s2 = jax.random.normal(ks2, (300, s_dim), jnp.float32)
    a2 = jax.random.normal(ka2, (300, a_dim), jnp.float32)
    q2 = jax.block_until_ready(cnetq_forward(s2, a2, fused))
    ref2 = reference_forward(s2, a2, params)
    assert q2.shape == (300, 1)
    assert jnp.allclose(q2, ref2, atol=1e-4, rtol=1e-4), (q2, ref2)

    # Large batch (multiple grid steps -> double-buffered 512-wide streaming).
    s3 = jax.random.normal(ks, (1300, s_dim), jnp.float32)
    a3 = jax.random.normal(ka, (1300, a_dim), jnp.float32)
    q3 = jax.block_until_ready(cnetq_forward(s3, a3, fused))
    ref3 = reference_forward(s3, a3, params)
    assert q3.shape == (1300, 1)
    assert jnp.allclose(q3, ref3, atol=1e-4, rtol=1e-4), (q3, ref3)

    print("KERNEL_OK")
</pallas_src>

<mosaic_0001>
module attributes {stable_mosaic.version = 11 : i64} {
  func.func @cnetq_kernel(%arg0: i32, %arg1: memref<6x128xf32, #tpu.memory_space<vmem>>, %arg2: memref<32x6xf32, #tpu.memory_space<vmem>>, %arg3: memref<32x1xf32, #tpu.memory_space<vmem>>, %arg4: memref<1x32xf32, #tpu.memory_space<vmem>>, %arg5: memref<1x1xf32, #tpu.memory_space<smem>>, %arg6: memref<1x128xf32, #tpu.memory_space<vmem>>) attributes {dimension_semantics = [#tpu.dimension_semantics<parallel>], iteration_bounds = array<i64: 1>, scalar_prefetch = 0 : i64, scratch_operands = 0 : i64, tpu.core_type = #tpu.core_type<tc>, window_params = [{transform_indices = @transform_0, window_bounds = array<i64: 6, 128>}, {pipeline_mode = #tpu.pipeline_mode<synchronous>, transform_indices = @transform_1, window_bounds = array<i64: 32, 6>}, {pipeline_mode = #tpu.pipeline_mode<synchronous>, transform_indices = @transform_2, window_bounds = array<i64: 32, 1>}, {pipeline_mode = #tpu.pipeline_mode<synchronous>, transform_indices = @transform_3, window_bounds = array<i64: 1, 32>}, {transform_indices = @transform_4, window_bounds = array<i64: 1, 1>}, {transform_indices = @transform_5, window_bounds = array<i64: 1, 128>}]} {
    %c0 = arith.constant 0 : index
    %c0_0 = arith.constant 0 : index
    %0 = vector.load %arg2[%c0, %c0_0] : memref<32x6xf32, #tpu.memory_space<vmem>>, vector<32x6xf32>
    %c0_1 = arith.constant 0 : index
    %c0_2 = arith.constant 0 : index
    %1 = vector.load %arg1[%c0_1, %c0_2] : memref<6x128xf32, #tpu.memory_space<vmem>>, vector<6x128xf32>
    %cst = arith.constant dense<0.000000e+00> : vector<32x128xf32>
    %2 = tpu.matmul %0, %1, %cst {dimension_numbers = #tpu.dot_dimension_numbers<[1], [0], [0], [1], [0, 0, 1, 1], [], []>} : vector<32x6xf32>, vector<6x128xf32>, vector<32x128xf32> -> vector<32x128xf32>
    %c0_3 = arith.constant 0 : index
    %c0_4 = arith.constant 0 : index
    %3 = vector.load %arg3[%c0_3, %c0_4] : memref<32x1xf32, #tpu.memory_space<vmem>>, vector<32x1xf32>
    %4 = vector.broadcast %3 : vector<32x1xf32> to vector<32x128xf32>
    %5 = arith.addf %2, %4 : vector<32x128xf32>
    %cst_5 = arith.constant 0.000000e+00 : f32
    %6 = vector.broadcast %cst_5 : f32 to vector<32x128xf32>
    %7 = arith.maximumf %5, %6 : vector<32x128xf32>
    %c0_6 = arith.constant 0 : index
    %c0_7 = arith.constant 0 : index
    %8 = vector.load %arg4[%c0_6, %c0_7] : memref<1x32xf32, #tpu.memory_space<vmem>>, vector<1x32xf32>
    %cst_8 = arith.constant dense<0.000000e+00> : vector<1x128xf32>
    %9 = tpu.matmul %8, %7, %cst_8 {dimension_numbers = #tpu.dot_dimension_numbers<[1], [0], [0], [1], [0, 0, 1, 1], [], []>} : vector<1x32xf32>, vector<32x128xf32>, vector<1x128xf32> -> vector<1x128xf32>
    %c0_9 = arith.constant 0 : index
    %c0_10 = arith.constant 0 : index
    %10 = memref.load %arg5[%c0_9, %c0_10] : memref<1x1xf32, #tpu.memory_space<smem>>
    %11 = vector.broadcast %10 : f32 to vector<1x128xf32>
    %12 = arith.addf %9, %11 : vector<1x128xf32>
    %c0_11 = arith.constant 0 : index
    %c0_12 = arith.constant 0 : index
    %13 = vector.load %arg6[%c0_11, %c0_12] : memref<1x128xf32, #tpu.memory_space<vmem>>, vector<1x128xf32>
    tpu.vector_store %arg6[%c0_11, %c0_12], %12 {strides = array<i32>} : memref<1x128xf32, #tpu.memory_space<vmem>>, vector<1x128xf32>,
    return
  }
  func.func @transform_0(%arg0: i32) -> (i32, i32) {
    %c0_i32 = arith.constant 0 : i32
    %c0_i32_0 = arith.constant 0 : i32
    return %c0_i32, %arg0 : i32, i32
  }
  func.func @transform_1(%arg0: i32) -> (i32, i32) {
    %c0_i32 = arith.constant 0 : i32
    %c0_i32_0 = arith.constant 0 : i32
    %c0_i32_1 = arith.constant 0 : i32
    return %c0_i32, %c0_i32_0 : i32, i32
  }
  func.func @transform_2(%arg0: i32) -> (i32, i32) {
    %c0_i32 = arith.constant 0 : i32
    %c0_i32_0 = arith.constant 0 : i32
    %c0_i32_1 = arith.constant 0 : i32
    return %c0_i32, %c0_i32_0 : i32, i32
  }
  func.func @transform_3(%arg0: i32) -> (i32, i32) {
    %c0_i32 = arith.constant 0 : i32
    %c0_i32_0 = arith.constant 0 : i32
    %c0_i32_1 = arith.constant 0 : i32
    return %c0_i32, %c0_i32_0 : i32, i32
  }
  func.func @transform_4(%arg0: i32) -> (i32, i32) {
    %c0_i32 = arith.constant 0 : i32
    %c0_i32_0 = arith.constant 0 : i32
    %c0_i32_1 = arith.constant 0 : i32
    return %c0_i32, %c0_i32_0 : i32, i32
  }
  func.func @transform_5(%arg0: i32) -> (i32, i32) {
    %c0_i32 = arith.constant 0 : i32
    %c0_i32_0 = arith.constant 0 : i32
    return %c0_i32, %arg0 : i32, i32
  }
}

</mosaic_0001>

<llo_original>
// kernel: cnetq_forward_pallas.1
$region0: #{cnetq_forward_pallas.1}
  #allocation0 [shape = 'u32[]', space=smem, size = 0x4, offset = 0x4, fixed_abs, tag = 'smem constant byte address 0x4 - core index']
  #allocation1 [shape = 'u32[144,128]{1,0:T(1,128)}', space=vmem, size = 0x12000, scoped, tag = 'internal scratch']
  #allocation2 [shape = 'f32[1,1]{1,0:T(1,128)S(6)}', space=smem, size = 0x200, scoped, tag = 'scoped memory for cnetq_forward_pallas.1']
  %s0 = inlined_call_operand.vmem [shape: f32[6,128], index: 0, kind: input, shape index: {}]
  %s1 = inlined_call_operand.vmem [shape: f32[32,6], index: 1, kind: input, shape index: {}]
  %s2 = inlined_call_operand.vmem [shape: f32[32,1], index: 2, kind: input, shape index: {}]
  %s3 = inlined_call_operand.vmem [shape: f32[1,32], index: 3, kind: input, shape index: {}]
  %s4 = inlined_call_operand.<no memory space> [shape: f32[1,1], index: 4, kind: input, shape index: {}]
  %s5 = inlined_call_operand.vmem [shape: f32[1,128], index: 5, kind: output, shape index: {}]
  %s6 = sld [smem:[#allocation0]]
  $region30: #{cnetq_forward_pallas.1} parent=0
    _
  %s8 = ssub.s32 1, %s6
  %s9 = scalar_select 0, %s8, %s6
  %10 = sst [smem:[#allocation2]] %s4
  // Predicated region
  $region2: #{cnetq_forward_pallas.1} parent=0 // pred_check
    _
  $region3: #{cnetq_forward_pallas.1} parent=0 // pred_check_branch
    %12 = sbr.rel (0) target = $region5
  $region4: #{cnetq_forward_pallas.1} parent=0 // pred_region
    _
  $region5: #{cnetq_forward_pallas.1} parent=0 // pred_fallthru
    _
  // Predicated region
  $region6: #{cnetq_forward_pallas.1} parent=0 // pred_check
    _
  $region7: #{cnetq_forward_pallas.1} parent=0 // pred_check_branch
    %14 = sbr.rel (0) target = $region9
  $region8: #{cnetq_forward_pallas.1} parent=0 // pred_region
    _
  $region9: #{cnetq_forward_pallas.1} parent=0 // pred_fallthru
    _
  // Predicated region
  $region10: #{cnetq_forward_pallas.1} parent=0 // pred_check
    _
  $region11: #{cnetq_forward_pallas.1} parent=0 // pred_check_branch
    %16 = sbr.rel (0) target = $region13
  $region12: #{cnetq_forward_pallas.1} parent=0 // pred_region
    _
  $region13: #{cnetq_forward_pallas.1} parent=0 // pred_fallthru
    _
  // Predicated region
  $region14: #{cnetq_forward_pallas.1} parent=0 // pred_check
    _
  $region15: #{cnetq_forward_pallas.1} parent=0 // pred_check_branch
    %18 = sbr.rel (0) target = $region17
  $region16: #{cnetq_forward_pallas.1} parent=0 // pred_region
    _
  $region17: #{cnetq_forward_pallas.1} parent=0 // pred_fallthru
    _
  // Predicated region
  $region18: #{cnetq_forward_pallas.1} parent=0 // pred_check
    _
  $region19: #{cnetq_forward_pallas.1} parent=0 // pred_check_branch
    %20 = sbr.rel (0) target = $region21
  $region20: #{cnetq_forward_pallas.1} parent=0 // pred_region
    _
  $region21: #{cnetq_forward_pallas.1} parent=0 // pred_fallthru
    _
  %v21 = vld [vmem:[%s1] sm:$0xff]
  %v22 = vld [vmem:[%s1 + $0x8] sm:$0xff]
  %v23 = vld [vmem:[%s1 + $0x10] sm:$0xff]
  %v24 = vld [vmem:[%s1 + $0x18] sm:$0xff]
  %v25 = vld [vmem:[%s0] sm:$0x3f]
  %v26 = vld [vmem:[%s2] sm:$0xff]
  %v27 = vld [vmem:[%s2 + $0x8] sm:$0xff]
  %v28 = vld [vmem:[%s2 + $0x10] sm:$0xff]
  %v29 = vld [vmem:[%s2 + $0x18] sm:$0xff]
  %31 = vset.pattern.permute.xlu0 0
  %32 = vperm.xlu0 %31, %v26
  %v33 = vpop.permute.xlu0 %32
  %36 = vset.pattern.permute.xlu0 0
  %37 = vperm.xlu0 %36, %v27
  %v38 = vpop.permute.xlu0 %37
  %41 = vset.pattern.permute.xlu0 0
  %42 = vperm.xlu0 %41, %v28
  %v43 = vpop.permute.xlu0 %42
  %46 = vset.pattern.permute.xlu0 0
  %47 = vperm.xlu0 %46, %v29
  %v48 = vpop.permute.xlu0 %47
  %vm50 = vcmask 48128
  %v52 = vsel %vm50, %v21, 0
  %v55 = vsel %vm50, %v22, 0
  %v58 = vsel %vm50, %v23, 0
  %v61 = vsel %vm50, %v24, 0
  %vm63 = vcmask 1045504
  %v65 = vsel %vm63, %v25, 0
  %67 = vmatprep.subr.mxu0 0.0
  %68 = vmatpush1.msra.mxu0 %v65
  %69 = vmatprep.subr.mxu0 0.0
  %70 = vmatpush1.msra.mxu0 0.0
  %71 = vmatprep.subr.mxu0 0.0
  %72 = vmatpush1.msra.mxu0 0.0
  %73 = vmatprep.subr.mxu0 0.0
  %74 = vmatpush1.msra.mxu0 0.0
  %75 = vmatprep.subr.mxu0 0.0
  %76 = vmatpush1.msra.mxu0 0.0
  %77 = vmatprep.subr.mxu0 0.0
  %78 = vmatpush1.msra.mxu0 0.0
  %79 = vmatprep.subr.mxu0 0.0
  %80 = vmatpush1.msra.mxu0 0.0
  %81 = vmatprep.subr.mxu0 0.0
  %82 = vmatpush1.msra.mxu0 0.0
  %83 = vmatprep.subr.mxu0 0.0
  %84 = vmatpush1.msra.mxu0 0.0
  %85 = vmatprep.subr.mxu0 0.0
  %86 = vmatpush1.msra.mxu0 0.0
  %87 = vmatprep.subr.mxu0 0.0
  %88 = vmatpush1.msra.mxu0 0.0
  %89 = vmatprep.subr.mxu0 0.0
  %90 = vmatpush1.msra.mxu0 0.0
  %91 = vmatprep.subr.mxu0 0.0
  %92 = vmatpush1.msra.mxu0 0.0
  %93 = vmatprep.subr.mxu0 0.0
  %94 = vmatpush1.msra.mxu0 0.0
  %95 = vmatprep.subr.mxu0 0.0
  %96 = vmatpush1.msra.mxu0 0.0
  %97 = vmatprep.subr.mxu0 0.0
  %98 = vmatpush1.msra.mxu0 0.0
  %99 = vmatprep.subr.mxu0 0.0
  %100 = vmatpush1.msra.mxu0 0.0
  %101 = vmatprep.subr.mxu0 0.0
  %102 = vmatpush1.msra.mxu0 0.0
  %103 = vmatprep.subr.mxu0 0.0
  %104 = vmatpush1.msra.mxu0 0.0
  %105 = vmatprep.subr.mxu0 0.0
  %106 = vmatpush1.msra.mxu0 0.0
  %107 = vmatprep.subr.mxu0 0.0
  %108 = vmatpush1.msra.mxu0 0.0
  %109 = vmatprep.subr.mxu0 0.0
  %110 = vmatpush1.msra.mxu0 0.0
  %111 = vmatprep.subr.mxu0 0.0
  %112 = vmatpush1.msra.mxu0 0.0
  %113 = vmatprep.subr.mxu0 0.0
  %114 = vmatpush1.msra.mxu0 0.0
  %115 = vmatprep.subr.mxu0 0.0
  %116 = vmatpush1.msra.mxu0 0.0
  %117 = vmatprep.subr.mxu0 0.0
  %118 = vmatpush1.msra.mxu0 0.0
  %119 = vmatprep.subr.mxu0 0.0
  %120 = vmatpush1.msra.mxu0 0.0
  %121 = vmatprep.subr.mxu0 0.0
  %122 = vmatpush1.msra.mxu0 0.0
  %123 = vmatprep.subr.mxu0 0.0
  %124 = vmatpush1.msra.mxu0 0.0
  %125 = vmatprep.subr.mxu0 0.0
  %126 = vmatpush1.msra.mxu0 0.0
  %127 = vmatprep.subr.mxu0 0.0
  %128 = vmatpush1.msra.mxu0 0.0
  %129 = vmatprep.subr.mxu0 0.0
  %130 = vmatpush1.msra.mxu0 0.0
  %131 = vmatprep.mubr.f32.mxu0 0.0
  %132 = vmatmul.mubr.f32.gmra.mrb[0].mxu0 %v52
  %v133 = vpop.f32.mrb[0].mxu0
  %v134 = vadd.f32 %v33, %v133
  %v135 = vpop.f32.mrb[0].mxu0
  %136 = vmatprep.mubr.f32.mxu0 0.0
  %137 = vmatmul.mubr.f32.gmra.mrb[0].mxu0 %v55
  %v138 = vpop.f32.mrb[0].mxu0
  %v139 = vadd.f32 %v38, %v138
  %v140 = vpop.f32.mrb[0].mxu0
  %141 = vmatprep.mubr.f32.mxu0 0.0
  %142 = vmatmul.mubr.f32.gmra.mrb[0].mxu0 %v58
  %v143 = vpop.f32.mrb[0].mxu0
  %v144 = vadd.f32 %v43, %v143
  %v145 = vpop.f32.mrb[0].mxu0
  %146 = vmatprep.mubr.f32.mxu0 0.0
  %147 = vmatmul.mubr.f32.gmra.mrb[0].mxu0 %v61
  %v148 = vpop.f32.mrb[0].mxu0
  %v149 = vadd.f32 %v48, %v148
  %v150 = vpop.f32.mrb[0].mxu0
  %151 = vdwg.mxu0
  %v152 = vmax.f32 %v134, 0.0
  %v153 = vmax.f32 %v139, 0.0
  %v154 = vmax.f32 %v144, 0.0
  %v155 = vmax.f32 %v149, 0.0
  %v156 = vld [vmem:[%s3] sm:$0x1]
  %s157 = sld [smem:[#allocation2]]
  %v158 = vstv %s157
  %vm159 = vcmask 261120
  %v161 = vsel %vm159, %v156, 0
  %163 = vmatprep.subr.mxu0 0.0
  %164 = vmatpush1.msra.mxu0 %v152
  %165 = vmatprep.subr.mxu0 0.0
  %166 = vmatpush1.msra.mxu0 %v153
  %167 = vmatprep.subr.mxu0 0.0
  %168 = vmatpush1.msra.mxu0 %v154
  %169 = vmatprep.subr.mxu0 0.0
  %170 = vmatpush1.msra.mxu0 %v155
  %171 = vmatprep.subr.mxu0 0.0
  %172 = vmatpush1.msra.mxu0 0.0
  %173 = vmatprep.subr.mxu0 0.0
  %174 = vmatpush1.msra.mxu0 0.0
  %175 = vmatprep.subr.mxu0 0.0
  %176 = vmatpush1.msra.mxu0 0.0
  %177 = vmatprep.subr.mxu0 0.0
  %178 = vmatpush1.msra.mxu0 0.0
  %179 = vmatprep.subr.mxu0 0.0
  %180 = vmatpush1.msra.mxu0 0.0
  %181 = vmatprep.subr.mxu0 0.0
  %182 = vmatpush1.msra.mxu0 0.0
  %183 = vmatprep.subr.mxu0 0.0
  %184 = vmatpush1.msra.mxu0 0.0
  %185 = vmatprep.subr.mxu0 0.0
  %186 = vmatpush1.msra.mxu0 0.0
  %187 = vmatprep.subr.mxu0 0.0
  %188 = vmatpush1.msra.mxu0 0.0
  %189 = vmatprep.subr.mxu0 0.0
  %190 = vmatpush1.msra.mxu0 0.0
  %191 = vmatprep.subr.mxu0 0.0
  %192 = vmatpush1.msra.mxu0 0.0
  %193 = vmatprep.subr.mxu0 0.0
  %194 = vmatpush1.msra.mxu0 0.0
  %195 = vmatprep.subr.mxu0 0.0
  %196 = vmatpush1.msra.mxu0 0.0
  %197 = vmatprep.subr.mxu0 0.0
  %198 = vmatpush1.msra.mxu0 0.0
  %199 = vmatprep.subr.mxu0 0.0
  %200 = vmatpush1.msra.mxu0 0.0
  %201 = vmatprep.subr.mxu0 0.0
  %202 = vmatpush1.msra.mxu0 0.0
  %203 = vmatprep.subr.mxu0 0.0
  %204 = vmatpush1.msra.mxu0 0.0
  %205 = vmatprep.subr.mxu0 0.0
  %206 = vmatpush1.msra.mxu0 0.0
  %207 = vmatprep.subr.mxu0 0.0
  %208 = vmatpush1.msra.mxu0 0.0
  %209 = vmatprep.subr.mxu0 0.0
  %210 = vmatpush1.msra.mxu0 0.0
  %211 = vmatprep.subr.mxu0 0.0
  %212 = vmatpush1.msra.mxu0 0.0
  %213 = vmatprep.subr.mxu0 0.0
  %214 = vmatpush1.msra.mxu0 0.0
  %215 = vmatprep.subr.mxu0 0.0
  %216 = vmatpush1.msra.mxu0 0.0
  %217 = vmatprep.subr.mxu0 0.0
  %218 = vmatpush1.msra.mxu0 0.0
  %219 = vmatprep.subr.mxu0 0.0
  %220 = vmatpush1.msra.mxu0 0.0
  %221 = vmatprep.subr.mxu0 0.0
  %222 = vmatpush1.msra.mxu0 0.0
  %223 = vmatprep.subr.mxu0 0.0
  %224 = vmatpush1.msra.mxu0 0.0
  %225 = vmatprep.subr.mxu0 0.0
  %226 = vmatpush1.msra.mxu0 0.0
  %227 = vmatprep.mubr.f32.mxu0 0.0
  %228 = vmatmul.mubr.f32.gmra.mrb[0].mxu0 %v161
  %v229 = vpop.f32.mrb[0].mxu0
  %v230 = vadd.f32 %v158, %v229
  %v231 = vpop.f32.mrb[0].mxu0
  %232 = vdwg.mxu0
  %233 = vst [vmem:[%s5] sm:$0x1] %v230
  // Predicated region
  $region22: #{cnetq_forward_pallas.1} parent=0 // pred_check
    _
  $region23: #{cnetq_forward_pallas.1} parent=0 // pred_check_branch
    %235 = sbr.rel (0) target = $region25
  $region24: #{cnetq_forward_pallas.1} parent=0 // pred_region
    _
  $region25: #{cnetq_forward_pallas.1} parent=0 // pred_fallthru
    _
  // Predicated region
  $region26: #{cnetq_forward_pallas.1} parent=0 // pred_check
    _
  $region27: #{cnetq_forward_pallas.1} parent=0 // pred_check_branch
    %237 = sbr.rel (0) target = $region29
  $region28: #{cnetq_forward_pallas.1} parent=0 // pred_region
    _
  $region29: #{cnetq_forward_pallas.1} parent=0 // pred_fallthru
    _

</llo_original>
